<compile_context>
chip_gen: v6e
topology: v6e:2x2x1
jax: 0.10.0
libtpu: 0.0.40
codegen_flags: <defaults>
</compile_context>

<pallas_src>
import functools

import jax
import jax.numpy as jnp
from jax.experimental import pallas as pl
from jax.experimental.pallas import tpu as pltpu

LANE = 128


def _round_up(x, m):
    return ((x + m - 1) // m) * m


# ----------------------------------------------------------------------------
# Pallas kernel: one grid step == B_tile batch rows, fully fused block.
# ----------------------------------------------------------------------------
def _make_dcconv_kernel(B, L, K, dilation, pad, Cip, Cop):
    shifts = tuple(j * dilation for j in range(K))   # tap read offsets in padded time

    def kernel(x_ref, w1_ref, b1_ref, w2_ref, b2_ref, wd_ref, bd_ref,
               o_ref, mid_ref):
        # x_ref : (B, L+pad, Cip) f32  causally (left) zero-padded, channel-padded NLC
        # w1_ref: (K*Cip, Cop)   bf16  conv1 weights, BN1 folded, im2col-packed taps
        # b1_ref: (1, Cop)       f32   conv1 bias with BN1 folded
        # w2_ref: (K*Cop, Cop)   bf16, b2_ref: (1, Cop) f32
        # wd_ref: (Cip, Cop)     bf16  1x1 downsample, bd_ref: (1, Cop) f32
        # o_ref : (B, L, Cop)    f32   lane-dense output
        # mid_ref:(B, L+pad, Cop) f32  VMEM scratch with left-padded conv1 acts

        # Zero the (persistent) causal-pad rows of the scratch only once.
        # NOTE: the staging scratch could be replaced by in-register
        #       pltpu.roll shifts; the scratch path is kept for robustness.
        if pad > 0:
            @pl.when(pl.program_id(0) == 0)
            def _init_pad():
                mid_ref[:, 0:pad, :] = jnp.zeros((B, pad, Cop), jnp.float32)

        # ---- conv1: K dilated taps fused into a single im2col MXU matmul ----
        im1 = jnp.concatenate(
            [x_ref[:, pl.ds(s, L), :] for s in shifts], axis=-1
        ).astype(jnp.bfloat16)                                   # (B, L, K*Cip)
        a1 = jnp.dot(im1.reshape(B * L, K * Cip), w1_ref[...],
                     preferred_element_type=jnp.float32)         # (B*L, Cop)
        a1 = jnp.maximum(a1 + b1_ref[...], 0.0)                  # bias+BN folded, ReLU
        # dropout1: identity (inference)

        # ---- stage conv1 output into the left-padded scratch ----------------
        mid_ref[:, pl.ds(pad, L), :] = a1.reshape(B, L, Cop)

        # ---- conv2: same fused im2col matmul over the staged activations ----
        im2 = jnp.concatenate(
            [mid_ref[:, pl.ds(s, L), :] for s in shifts], axis=-1
        ).astype(jnp.bfloat16)                                   # (B, L, K*Cop)
        a2 = jnp.dot(im2.reshape(B * L, K * Cop), w2_ref[...],
                     preferred_element_type=jnp.float32)
        a2 = jnp.maximum(a2 + b2_ref[...], 0.0)
        # dropout2: identity (inference)

        # ---- residual (1x1 downsample conv) + final ReLU ---------------------
        xr = x_ref[:, pl.ds(pad, L), :].astype(jnp.bfloat16)     # (B, L, Cip)
        res = jnp.dot(xr.reshape(B * L, Cip), wd_ref[...],
                      preferred_element_type=jnp.float32) + bd_ref[...]
        o_ref[...] = jnp.maximum(a2 + res, 0.0).reshape(B, L, Cop)

    return kernel


# ----------------------------------------------------------------------------
# Batch-tile selection: amortize per-step overhead, stay within a VMEM budget,
# and prefer >=2 grid steps (both v7x TensorCores) once M is MXU-sized.
# ----------------------------------------------------------------------------
def _pick_batch_tile(N, L, Cip, Cop, K, pad):
    Lp = L + pad

    def vmem_bytes(bt):
        rows = bt * L
        x_blk = bt * Lp * Cip * 4 * 2            # f32 input block, double-buffered
        o_blk = bt * L * Cop * 4 * 2             # f32 output block, double-buffered
        mid = bt * Lp * Cop * 4                  # scratch
        w = (K * Cip * Cop + K * Cop * Cop + Cip * Cop) * 2 * 2
        temps = rows * (K * Cip + K * Cop) * 6 + rows * Cop * 16
        return x_blk + o_blk + mid + w + temps

    budget = 12 * 1024 * 1024
    best = 1
    for bt in range(1, N + 1):
        if N % bt == 0 and bt * L <= 1024 and vmem_bytes(bt) <= budget:
            best = bt
    for bt in range(best, 0, -1):
        if (N % bt == 0 and bt * L >= 256 and N // bt >= 2
                and vmem_bytes(bt) <= budget):
            return bt
    return best


# ----------------------------------------------------------------------------
# Wrapper: NCL in, NCL out (PyTorch convention). Takes PyTorch-layout params.
# ----------------------------------------------------------------------------
def dcconv_forward(x_ncl, torch_params, *, kernel_size, stride, padding, dilation):
    assert stride == 1, "TCN DCConv uses stride=1 (chomp assumes it)"
    assert padding == dilation * (kernel_size - 1), \
        "causal TCN convention: padding == dilation * (kernel_size - 1)"
    w1, b1, bn1, w2, b2, bn2, wd, bd = torch_params
    N, Cin, L = x_ncl.shape
    Cout = w1.shape[0]
    K = kernel_size
    Cip = _round_up(Cin, LANE)
    Cop = _round_up(Cout, LANE)
    Lp = L + padding

    # ---- fold BatchNorm1d (eval) affine + conv bias into the conv weights ---
    def fold_bn(w_oik, b, bn):
        scale, shift = bn[0], bn[1]
        return w_oik * scale[:, None, None], b * scale + shift

    w1f, b1f = fold_bn(w1.astype(jnp.float32), b1, bn1)
    w2f, b2f = fold_bn(w2.astype(jnp.float32), b2, bn2)

    # ---- pack conv weights: (O, I, K) -> channel-padded (K*Ip, Op), bf16 ----
    def pack_conv(w_oik, Ip, Op):
        k = w_oik.shape[2]
        w_kio = jnp.transpose(w_oik, (2, 1, 0))                  # (K, I, O)
        w_kio = jnp.pad(w_kio, ((0, 0),
                                (0, Ip - w_kio.shape[1]),
                                (0, Op - w_kio.shape[2])))
        return w_kio.reshape(k * Ip, Op).astype(jnp.bfloat16)

    def pad_bias(b, Op):
        return jnp.pad(b, (0, Op - b.shape[0])).reshape(1, Op).astype(jnp.float32)

    w1p, b1p = pack_conv(w1f, Cip, Cop), pad_bias(b1f, Cop)
    w2p, b2p = pack_conv(w2f, Cop, Cop), pad_bias(b2f, Cop)
    wdp = jnp.pad(wd[:, :, 0].T,
                  ((0, Cip - Cin), (0, Cop - Cout))).astype(jnp.bfloat16)
    bdp = pad_bias(bd, Cop)

    # ---- input: NCL -> NLC, causal left pad in time, channel-pad to lanes ---
    x_nlc = jnp.transpose(x_ncl, (0, 2, 1)).astype(jnp.float32)
    xp = jnp.pad(x_nlc, ((0, 0), (padding, 0), (0, Cip - Cin)))   # (N, Lp, Cip)

    bt = _pick_batch_tile(N, L, Cip, Cop, K, padding)
    kern = _make_dcconv_kernel(bt, L, K, dilation, padding, Cip, Cop)

    out = pl.pallas_call(
        kern,
        out_shape=jax.ShapeDtypeStruct((N, L, Cop), jnp.float32),
        grid_spec=pltpu.PrefetchScalarGridSpec(
            num_scalar_prefetch=0,
            grid=(N // bt,),
            in_specs=[
                pl.BlockSpec((bt, Lp, Cip), lambda n: (n, 0, 0)),
                pl.BlockSpec((K * Cip, Cop), lambda n: (0, 0)),
                pl.BlockSpec((1, Cop), lambda n: (0, 0)),
                pl.BlockSpec((K * Cop, Cop), lambda n: (0, 0)),
                pl.BlockSpec((1, Cop), lambda n: (0, 0)),
                pl.BlockSpec((Cip, Cop), lambda n: (0, 0)),
                pl.BlockSpec((1, Cop), lambda n: (0, 0)),
            ],
            out_specs=pl.BlockSpec((bt, L, Cop), lambda n: (n, 0, 0)),
            scratch_shapes=[pltpu.VMEM((bt, Lp, Cop), jnp.float32)],
        ),
        compiler_params=pltpu.CompilerParams(
            dimension_semantics=("parallel",)),
    )(xp, w1p, b1p, w2p, b2p, wdp, bdp)

    # lane-dense padded output -> original channel count, back to NCL
    return jnp.transpose(out[:, :, :Cout], (0, 2, 1))


# ----------------------------------------------------------------------------
# Deterministic parameter construction (synthetic, mirrors __init__ shapes).
# ----------------------------------------------------------------------------
def init_params(key, Cin, Cout, K):
    ks = jax.random.split(key, 6)
    eps = 1e-5

    def weight_norm(v):            # weight_norm init: g = ||v||  ->  w == v
        nrm = jnp.sqrt(jnp.sum(v * v, axis=(1, 2), keepdims=True))
        return nrm * v / nrm

    v1 = 0.01 * jax.random.normal(ks[0], (Cout, Cin, K), jnp.float32)
    w1 = weight_norm(v1)
    b1 = 0.05 * jax.random.normal(ks[1], (Cout,), jnp.float32)
    v2 = 0.01 * jax.random.normal(ks[2], (Cout, Cout, K), jnp.float32)
    w2 = weight_norm(v2)
    b2 = 0.05 * jax.random.normal(ks[3], (Cout,), jnp.float32)
    wd = 0.01 * jax.random.normal(ks[4], (Cout, Cin, 1), jnp.float32)
    bd = 0.05 * jax.random.normal(ks[5], (Cout,), jnp.float32)

    # BatchNorm1d eval: gamma=1, beta=0, running_mean=0, running_var=1
    gamma = jnp.ones((Cout,), jnp.float32)
    beta = jnp.zeros((Cout,), jnp.float32)
    rmean = jnp.zeros((Cout,), jnp.float32)
    rvar = jnp.ones((Cout,), jnp.float32)
    scale = gamma / jnp.sqrt(rvar + eps)
    shift = beta - rmean * scale
    bn = jnp.stack([scale, shift], axis=0)                        # (2, Cout)

    return (w1, b1, bn, w2, b2, bn, wd, bd)


# ----------------------------------------------------------------------------
# Pure-JAX f32 reference (lax.conv_general_dilated) for correctness checking.
# ----------------------------------------------------------------------------
def reference(x, torch_params, *, padding, dilation):
    w1, b1, bn1, w2, b2, bn2, wd, bd = torch_params

    def conv(inp, w, b):
        y = jax.lax.conv_general_dilated(
            inp, w, window_strides=(1,), padding=[(padding, padding)],
            rhs_dilation=(dilation,), dimension_numbers=('NCH', 'OIH', 'NCH'))
        return y + b[None, :, None]

    def chomp(y):
        return y[:, :, :y.shape[2] - padding]

    out = chomp(conv(x, w1, b1))
    out = out * bn1[0][None, :, None] + bn1[1][None, :, None]
    out = jnp.maximum(out, 0.0)
    out = chomp(conv(out, w2, b2))
    out = out * bn2[0][None, :, None] + bn2[1][None, :, None]
    out = jnp.maximum(out, 0.0)
    res = jnp.einsum('ncl,oc->nol', x, wd[:, :, 0]) + bd[None, :, None]
    return jnp.maximum(out + res, 0.0)


if __name__ == "__main__":
    # Small shapes consistent with the module: x is (batch, n_inputs, seq_len)
    N, Cin, Cout, L = 2, 4, 8, 16
    kernel_size, stride, dilation = 3, 1, 2
    padding = (kernel_size - 1) * dilation     # causal TCN padding

    key = jax.random.PRNGKey(0)
    kx, kp = jax.random.split(key)
    x = jax.random.normal(kx, (N, Cin, L), jnp.float32)
    torch_params = init_params(kp, Cin, Cout, kernel_size)

    run = functools.partial(dcconv_forward, kernel_size=kernel_size,
                            stride=stride, padding=padding, dilation=dilation)
    y = jax.block_until_ready(jax.jit(run)(x, torch_params))

    y_ref = reference(x, torch_params, padding=padding, dilation=dilation)

    assert y.shape == (N, Cout, L), y.shape
    max_err = float(jnp.max(jnp.abs(y - y_ref)))
    # bf16 MXU operands vs f32 reference -> loosened tolerance
    assert jnp.allclose(y, y_ref, rtol=2e-2, atol=2e-3), max_err
    print("KERNEL_OK")
</pallas_src>

<mosaic_0001>
module attributes {stable_mosaic.version = 11 : i64} {
  func.func @kernel(%arg0: i32, %arg1: memref<2x20x128xf32, #tpu.memory_space<vmem>>, %arg2: memref<384x128xbf16, #tpu.memory_space<vmem>>, %arg3: memref<1x128xf32, #tpu.memory_space<vmem>>, %arg4: memref<384x128xbf16, #tpu.memory_space<vmem>>, %arg5: memref<1x128xf32, #tpu.memory_space<vmem>>, %arg6: memref<128x128xbf16, #tpu.memory_space<vmem>>, %arg7: memref<1x128xf32, #tpu.memory_space<vmem>>, %arg8: memref<2x16x128xf32, #tpu.memory_space<vmem>>, %arg9: memref<2x20x128xf32, #tpu.memory_space<vmem>>) attributes {dimension_semantics = [#tpu.dimension_semantics<parallel>], iteration_bounds = array<i64: 1>, scalar_prefetch = 0 : i64, scratch_operands = 1 : i64, tpu.core_type = #tpu.core_type<tc>, window_params = [{transform_indices = @transform_0, window_bounds = array<i64: 2, 20, 128>}, {pipeline_mode = #tpu.pipeline_mode<synchronous>, transform_indices = @transform_1, window_bounds = array<i64: 384, 128>}, {pipeline_mode = #tpu.pipeline_mode<synchronous>, transform_indices = @transform_2, window_bounds = array<i64: 1, 128>}, {pipeline_mode = #tpu.pipeline_mode<synchronous>, transform_indices = @transform_3, window_bounds = array<i64: 384, 128>}, {pipeline_mode = #tpu.pipeline_mode<synchronous>, transform_indices = @transform_4, window_bounds = array<i64: 1, 128>}, {pipeline_mode = #tpu.pipeline_mode<synchronous>, transform_indices = @transform_5, window_bounds = array<i64: 128, 128>}, {pipeline_mode = #tpu.pipeline_mode<synchronous>, transform_indices = @transform_6, window_bounds = array<i64: 1, 128>}, {transform_indices = @transform_7, window_bounds = array<i64: 2, 16, 128>}]} {
    %c0_i32 = arith.constant 0 : i32
    %0 = arith.cmpi eq, %arg0, %c0_i32 : i32
    %1 = arith.extui %0 : i1 to i32
    %c0_i32_0 = arith.constant 0 : i32
    %2 = arith.cmpi ne, %1, %c0_i32_0 : i32
    scf.if %2 {
      %cst_42 = arith.constant 0.000000e+00 : f32
      %44 = vector.broadcast %cst_42 : f32 to vector<2x4x128xf32>
      %c0_43 = arith.constant 0 : index
      %c0_44 = arith.constant 0 : index
      %c0_45 = arith.constant 0 : index
      %45 = vector.load %arg9[%c0_43, %c0_44, %c0_45] : memref<2x20x128xf32, #tpu.memory_space<vmem>>, vector<2x4x128xf32>
      tpu.vector_store %arg9[%c0_43, %c0_44, %c0_45], %44 {strides = array<i32>} : memref<2x20x128xf32, #tpu.memory_space<vmem>>, vector<2x4x128xf32>,
    } else {
    }
    %c0 = arith.constant 0 : index
    %c0_1 = arith.constant 0 : index
    %c0_2 = arith.constant 0 : index
    %3 = vector.load %arg1[%c0, %c0_1, %c0_2] : memref<2x20x128xf32, #tpu.memory_space<vmem>>, vector<2x16x128xf32>
    %c0_3 = arith.constant 0 : index
    %c2 = arith.constant 2 : index
    %c0_4 = arith.constant 0 : index
    %4 = vector.load %arg1[%c0_3, %c2, %c0_4] : memref<2x20x128xf32, #tpu.memory_space<vmem>>, vector<2x16x128xf32>
    %c0_5 = arith.constant 0 : index
    %c4 = arith.constant 4 : index
    %c0_6 = arith.constant 0 : index
    %5 = vector.load %arg1[%c0_5, %c4, %c0_6] : memref<2x20x128xf32, #tpu.memory_space<vmem>>, vector<2x16x128xf32>
    %6 = tpu.concatenate %3, %4, %5 in 2 : vector<2x16x128xf32>, vector<2x16x128xf32>, vector<2x16x128xf32> -> vector<2x16x384xf32>
    %7 = arith.truncf %6 : vector<2x16x384xf32> to vector<2x16x384xbf16>
    %8 = vector.shape_cast %7 : vector<2x16x384xbf16> to vector<32x384xbf16>
    %c0_7 = arith.constant 0 : index
    %c0_8 = arith.constant 0 : index
    %9 = vector.load %arg2[%c0_7, %c0_8] : memref<384x128xbf16, #tpu.memory_space<vmem>>, vector<384x128xbf16>
    %cst = arith.constant dense<0.000000e+00> : vector<32x128xf32>
    %10 = tpu.matmul %8, %9, %cst {dimension_numbers = #tpu.dot_dimension_numbers<[1], [0], [0], [1], [0, 0, 1, 1], [], []>} : vector<32x384xbf16>, vector<384x128xbf16>, vector<32x128xf32> -> vector<32x128xf32>
    %c0_9 = arith.constant 0 : index
    %c0_10 = arith.constant 0 : index
    %11 = vector.load %arg3[%c0_9, %c0_10] : memref<1x128xf32, #tpu.memory_space<vmem>>, vector<1x128xf32>
    %12 = vector.broadcast %11 : vector<1x128xf32> to vector<32x128xf32>
    %13 = arith.addf %10, %12 : vector<32x128xf32>
    %cst_11 = arith.constant 0.000000e+00 : f32
    %14 = vector.broadcast %cst_11 : f32 to vector<32x128xf32>
    %15 = arith.maximumf %13, %14 : vector<32x128xf32>
    %16 = vector.shape_cast %15 : vector<32x128xf32> to vector<2x16x128xf32>
    %c0_12 = arith.constant 0 : index
    %c4_13 = arith.constant 4 : index
    %c0_14 = arith.constant 0 : index
    %17 = vector.load %arg9[%c0_12, %c4_13, %c0_14] : memref<2x20x128xf32, #tpu.memory_space<vmem>>, vector<2x16x128xf32>
    tpu.vector_store %arg9[%c0_12, %c4_13, %c0_14], %16 {strides = array<i32>} : memref<2x20x128xf32, #tpu.memory_space<vmem>>, vector<2x16x128xf32>,
    %c0_15 = arith.constant 0 : index
    %c0_16 = arith.constant 0 : index
    %c0_17 = arith.constant 0 : index
    %18 = vector.load %arg9[%c0_15, %c0_16, %c0_17] : memref<2x20x128xf32, #tpu.memory_space<vmem>>, vector<2x16x128xf32>
    %c0_18 = arith.constant 0 : index
    %c2_19 = arith.constant 2 : index
    %c0_20 = arith.constant 0 : index
    %19 = vector.load %arg9[%c0_18, %c2_19, %c0_20] : memref<2x20x128xf32, #tpu.memory_space<vmem>>, vector<2x16x128xf32>
    %c0_21 = arith.constant 0 : index
    %c4_22 = arith.constant 4 : index
    %c0_23 = arith.constant 0 : index
    %20 = vector.load %arg9[%c0_21, %c4_22, %c0_23] : memref<2x20x128xf32, #tpu.memory_space<vmem>>, vector<2x16x128xf32>
    %21 = tpu.concatenate %18, %19, %20 in 2 : vector<2x16x128xf32>, vector<2x16x128xf32>, vector<2x16x128xf32> -> vector<2x16x384xf32>
    %22 = arith.truncf %21 : vector<2x16x384xf32> to vector<2x16x384xbf16>
    %23 = vector.shape_cast %22 : vector<2x16x384xbf16> to vector<32x384xbf16>
    %c0_24 = arith.constant 0 : index
    %c0_25 = arith.constant 0 : index
    %24 = vector.load %arg4[%c0_24, %c0_25] : memref<384x128xbf16, #tpu.memory_space<vmem>>, vector<384x128xbf16>
    %cst_26 = arith.constant dense<0.000000e+00> : vector<32x128xf32>
    %25 = tpu.matmul %23, %24, %cst_26 {dimension_numbers = #tpu.dot_dimension_numbers<[1], [0], [0], [1], [0, 0, 1, 1], [], []>} : vector<32x384xbf16>, vector<384x128xbf16>, vector<32x128xf32> -> vector<32x128xf32>
    %c0_27 = arith.constant 0 : index
    %c0_28 = arith.constant 0 : index
    %26 = vector.load %arg5[%c0_27, %c0_28] : memref<1x128xf32, #tpu.memory_space<vmem>>, vector<1x128xf32>
    %27 = vector.broadcast %26 : vector<1x128xf32> to vector<32x128xf32>
    %28 = arith.addf %25, %27 : vector<32x128xf32>
    %cst_29 = arith.constant 0.000000e+00 : f32
    %29 = vector.broadcast %cst_29 : f32 to vector<32x128xf32>
    %30 = arith.maximumf %28, %29 : vector<32x128xf32>
    %c0_30 = arith.constant 0 : index
    %c4_31 = arith.constant 4 : index
    %c0_32 = arith.constant 0 : index
    %31 = vector.load %arg1[%c0_30, %c4_31, %c0_32] : memref<2x20x128xf32, #tpu.memory_space<vmem>>, vector<2x16x128xf32>
    %32 = arith.truncf %31 : vector<2x16x128xf32> to vector<2x16x128xbf16>
    %33 = vector.shape_cast %32 : vector<2x16x128xbf16> to vector<32x128xbf16>
    %c0_33 = arith.constant 0 : index
    %c0_34 = arith.constant 0 : index
    %34 = vector.load %arg6[%c0_33, %c0_34] : memref<128x128xbf16, #tpu.memory_space<vmem>>, vector<128x128xbf16>
    %cst_35 = arith.constant dense<0.000000e+00> : vector<32x128xf32>
    %35 = tpu.matmul %33, %34, %cst_35 {dimension_numbers = #tpu.dot_dimension_numbers<[1], [0], [0], [1], [0, 0, 1, 1], [], []>} : vector<32x128xbf16>, vector<128x128xbf16>, vector<32x128xf32> -> vector<32x128xf32>
    %c0_36 = arith.constant 0 : index
    %c0_37 = arith.constant 0 : index
    %36 = vector.load %arg7[%c0_36, %c0_37] : memref<1x128xf32, #tpu.memory_space<vmem>>, vector<1x128xf32>
    %37 = vector.broadcast %36 : vector<1x128xf32> to vector<32x128xf32>
    %38 = arith.addf %35, %37 : vector<32x128xf32>
    %39 = arith.addf %30, %38 : vector<32x128xf32>
    %cst_38 = arith.constant 0.000000e+00 : f32
    %40 = vector.broadcast %cst_38 : f32 to vector<32x128xf32>
    %41 = arith.maximumf %39, %40 : vector<32x128xf32>
    %42 = vector.shape_cast %41 : vector<32x128xf32> to vector<2x16x128xf32>
    %c0_39 = arith.constant 0 : index
    %c0_40 = arith.constant 0 : index
    %c0_41 = arith.constant 0 : index
    %43 = vector.load %arg8[%c0_39, %c0_40, %c0_41] : memref<2x16x128xf32, #tpu.memory_space<vmem>>, vector<2x16x128xf32>
    tpu.vector_store %arg8[%c0_39, %c0_40, %c0_41], %42 {strides = array<i32>} : memref<2x16x128xf32, #tpu.memory_space<vmem>>, vector<2x16x128xf32>,
    return
  }
  func.func @transform_0(%arg0: i32) -> (i32, i32, i32) {
    %c0_i32 = arith.constant 0 : i32
    %c0_i32_0 = arith.constant 0 : i32
    %c0_i32_1 = arith.constant 0 : i32
    return %arg0, %c0_i32, %c0_i32_0 : i32, i32, i32
  }
  func.func @transform_1(%arg0: i32) -> (i32, i32) {
    %c0_i32 = arith.constant 0 : i32
    %c0_i32_0 = arith.constant 0 : i32
    %c0_i32_1 = arith.constant 0 : i32
    return %c0_i32, %c0_i32_0 : i32, i32
  }
  func.func @transform_2(%arg0: i32) -> (i32, i32) {
    %c0_i32 = arith.constant 0 : i32
    %c0_i32_0 = arith.constant 0 : i32
    %c0_i32_1 = arith.constant 0 : i32
    return %c0_i32, %c0_i32_0 : i32, i32
  }
  func.func @transform_3(%arg0: i32) -> (i32, i32) {
    %c0_i32 = arith.constant 0 : i32
    %c0_i32_0 = arith.constant 0 : i32
    %c0_i32_1 = arith.constant 0 : i32
    return %c0_i32, %c0_i32_0 : i32, i32
  }
  func.func @transform_4(%arg0: i32) -> (i32, i32) {
    %c0_i32 = arith.constant 0 : i32
    %c0_i32_0 = arith.constant 0 : i32
    %c0_i32_1 = arith.constant 0 : i32
    return %c0_i32, %c0_i32_0 : i32, i32
  }
  func.func @transform_5(%arg0: i32) -> (i32, i32) {
    %c0_i32 = arith.constant 0 : i32
    %c0_i32_0 = arith.constant 0 : i32
    %c0_i32_1 = arith.constant 0 : i32
    return %c0_i32, %c0_i32_0 : i32, i32
  }
  func.func @transform_6(%arg0: i32) -> (i32, i32) {
    %c0_i32 = arith.constant 0 : i32
    %c0_i32_0 = arith.constant 0 : i32
    %c0_i32_1 = arith.constant 0 : i32
    return %c0_i32, %c0_i32_0 : i32, i32
  }
  func.func @transform_7(%arg0: i32) -> (i32, i32, i32) {
    %c0_i32 = arith.constant 0 : i32
    %c0_i32_0 = arith.constant 0 : i32
    %c0_i32_1 = arith.constant 0 : i32
    return %arg0, %c0_i32, %c0_i32_0 : i32, i32, i32
  }
}

</mosaic_0001>

<llo_original>
// kernel: dcconv_forward.1
$region0: #{dcconv_forward.1}
  #allocation0 [shape = 'u32[]', space=smem, size = 0x4, offset = 0x4, fixed_abs, tag = 'smem constant byte address 0x4 - core index']
  #allocation1 [shape = 'u32[144,128]{1,0:T(1,128)}', space=vmem, size = 0x12000, scoped, tag = 'internal scratch']
  #allocation2 [shape = 'f32[2,20,128]{2,1,0:T(8,128)}', space=vmem, size = 0x6000, scoped, tag = 'scratch operand']
  %s0 = inlined_call_operand.vmem [shape: f32[2,20,128], index: 0, kind: input, shape index: {}]
  %s1 = inlined_call_operand.vmem [shape: bf16[384,128], index: 1, kind: input, shape index: {}]
  %s2 = inlined_call_operand.vmem [shape: f32[1,128], index: 2, kind: input, shape index: {}]
  %s3 = inlined_call_operand.vmem [shape: bf16[384,128], index: 3, kind: input, shape index: {}]
  %s4 = inlined_call_operand.vmem [shape: f32[1,128], index: 4, kind: input, shape index: {}]
  %s5 = inlined_call_operand.vmem [shape: bf16[128,128], index: 5, kind: input, shape index: {}]
  %s6 = inlined_call_operand.vmem [shape: f32[1,128], index: 6, kind: input, shape index: {}]
  %s7 = inlined_call_operand.vmem [shape: f32[2,16,128], index: 7, kind: output, shape index: {}]
  %s8 = sld [smem:[#allocation0]]
  $region42: #{dcconv_forward.1} parent=0
    _
  %s10 = ssub.s32 1, %s8
  %s11 = scalar_select 0, %s10, %s8
  // Predicated region
  $region2: #{dcconv_forward.1} parent=0 // pred_check
    _
  $region3: #{dcconv_forward.1} parent=0 // pred_check_branch
    %13 = sbr.rel (0) target = $region5
  $region4: #{dcconv_forward.1} parent=0 // pred_region
    _
  $region5: #{dcconv_forward.1} parent=0 // pred_fallthru
    _
  // Predicated region
  $region6: #{dcconv_forward.1} parent=0 // pred_check
    _
  $region7: #{dcconv_forward.1} parent=0 // pred_check_branch
    %15 = sbr.rel (0) target = $region9
  $region8: #{dcconv_forward.1} parent=0 // pred_region
    _
  $region9: #{dcconv_forward.1} parent=0 // pred_fallthru
    _
  // Predicated region
  $region10: #{dcconv_forward.1} parent=0 // pred_check
    _
  $region11: #{dcconv_forward.1} parent=0 // pred_check_branch
    %17 = sbr.rel (0) target = $region13
  $region12: #{dcconv_forward.1} parent=0 // pred_region
    _
  $region13: #{dcconv_forward.1} parent=0 // pred_fallthru
    _
  // Predicated region
  $region14: #{dcconv_forward.1} parent=0 // pred_check
    _
  $region15: #{dcconv_forward.1} parent=0 // pred_check_branch
    %19 = sbr.rel (0) target = $region17
  $region16: #{dcconv_forward.1} parent=0 // pred_region
    _
  $region17: #{dcconv_forward.1} parent=0 // pred_fallthru
    _
  // Predicated region
  $region18: #{dcconv_forward.1} parent=0 // pred_check
    _
  $region19: #{dcconv_forward.1} parent=0 // pred_check_branch
    %21 = sbr.rel (0) target = $region21
  $region20: #{dcconv_forward.1} parent=0 // pred_region
    _
  $region21: #{dcconv_forward.1} parent=0 // pred_fallthru
    _
  // Predicated region
  $region22: #{dcconv_forward.1} parent=0 // pred_check
    _
  $region23: #{dcconv_forward.1} parent=0 // pred_check_branch
    %23 = sbr.rel (0) target = $region25
  $region24: #{dcconv_forward.1} parent=0 // pred_region
    _
  $region25: #{dcconv_forward.1} parent=0 // pred_fallthru
    _
  // Predicated region
  $region26: #{dcconv_forward.1} parent=0 // pred_check
    _
  $region27: #{dcconv_forward.1} parent=0 // pred_check_branch
    %25 = sbr.rel (0) target = $region29
  $region28: #{dcconv_forward.1} parent=0 // pred_region
    _
  $region29: #{dcconv_forward.1} parent=0 // pred_fallthru
    _
  %p27 = scmp.eq.s32.totalorder 0, 0
  // Predicated region
  $region30: #{dcconv_forward.1} parent=0 // pred_check
    %p28 = pneg %p27
  $region31: #{dcconv_forward.1} parent=0 // pred_check_branch
    %30 = sbr.rel (%p28) target = $region33
  $region32: #{dcconv_forward.1} parent=0 // pred_region
    %31 = vst [vmem:[#allocation2] sm:$0xf] 0.0
    %32 = vst [vmem:[#allocation2 + $0x18] sm:$0xf] 0.0
  $region33: #{dcconv_forward.1} parent=0 // pred_fallthru
    _
  %v33 = vld [vmem:[%s0] sm:$0xff]
  %v34 = vld [vmem:[%s0 + $0x8] sm:$0xff]
  %v35 = vld [vmem:[%s0 + $0x18] sm:$0xff]
  %v36 = vld [vmem:[%s0 + $0x20] sm:$0xff]
  %v37 = vld [vmem:[%s0 + $0x2] sm:$0xff]
  %v38 = vld [vmem:[%s0 + $0xa] sm:$0xff]
  %v39 = vld [vmem:[%s0 + $0x1a] sm:$0xff]
  %v40 = vld [vmem:[%s0 + $0x22] sm:$0xff]
  %v41 = vld [vmem:[%s0 + $0x4] sm:$0xff]
  %v42 = vld [vmem:[%s0 + $0xc] sm:$0xff]
  %v43 = vld [vmem:[%s0 + $0x1c] sm:$0xff]
  %v44 = vld [vmem:[%s0 + $0x24] sm:$0xff]
  %v45 = vpack.c.bf16 %v34, %v33
  %v46 = vpack.c.bf16 %v38, %v37
  %v47 = vpack.c.bf16 %v42, %v41
  %v48 = vpack.c.bf16 %v36, %v35
  %v49 = vpack.c.bf16 %v40, %v39
  %v50 = vpack.c.bf16 %v44, %v43
  %v51 = vld [vmem:[%s1] sm:$0xf]
  %v52 = vld [vmem:[%s1 + $0x4] sm:$0xf]
  %v53 = vld [vmem:[%s1 + $0x8] sm:$0xf]
  %v54 = vld [vmem:[%s1 + $0xc] sm:$0xf]
  %v55 = vld [vmem:[%s1 + $0x10] sm:$0xf]
  %v56 = vld [vmem:[%s1 + $0x14] sm:$0xf]
  %v57 = vld [vmem:[%s1 + $0x18] sm:$0xf]
  %v58 = vld [vmem:[%s1 + $0x1c] sm:$0xf]
  %v59 = vld [vmem:[%s1 + $0x20] sm:$0xf]
  %v60 = vld [vmem:[%s1 + $0x24] sm:$0xf]
  %v61 = vld [vmem:[%s1 + $0x28] sm:$0xf]
  %v62 = vld [vmem:[%s1 + $0x2c] sm:$0xf]
  %v63 = vld [vmem:[%s1 + $0x30] sm:$0xf]
  %v64 = vld [vmem:[%s1 + $0x34] sm:$0xf]
  %v65 = vld [vmem:[%s1 + $0x38] sm:$0xf]
  %v66 = vld [vmem:[%s1 + $0x3c] sm:$0xf]
  %v67 = vld [vmem:[%s1 + $0x40] sm:$0xf]
  %v68 = vld [vmem:[%s1 + $0x44] sm:$0xf]
  %v69 = vld [vmem:[%s1 + $0x48] sm:$0xf]
  %v70 = vld [vmem:[%s1 + $0x4c] sm:$0xf]
  %v71 = vld [vmem:[%s1 + $0x50] sm:$0xf]
  %v72 = vld [vmem:[%s1 + $0x54] sm:$0xf]
  %v73 = vld [vmem:[%s1 + $0x58] sm:$0xf]
  %v74 = vld [vmem:[%s1 + $0x5c] sm:$0xf]
  %v75 = vld [vmem:[%s1 + $0x60] sm:$0xf]
  %v76 = vld [vmem:[%s1 + $0x64] sm:$0xf]
  %v77 = vld [vmem:[%s1 + $0x68] sm:$0xf]
  %v78 = vld [vmem:[%s1 + $0x6c] sm:$0xf]
  %v79 = vld [vmem:[%s1 + $0x70] sm:$0xf]
  %v80 = vld [vmem:[%s1 + $0x74] sm:$0xf]
  %v81 = vld [vmem:[%s1 + $0x78] sm:$0xf]
  %v82 = vld [vmem:[%s1 + $0x7c] sm:$0xf]
  %v83 = vld [vmem:[%s1 + $0x80] sm:$0xf]
  %v84 = vld [vmem:[%s1 + $0x84] sm:$0xf]
  %v85 = vld [vmem:[%s1 + $0x88] sm:$0xf]
  %v86 = vld [vmem:[%s1 + $0x8c] sm:$0xf]
  %v87 = vld [vmem:[%s1 + $0x90] sm:$0xf]
  %v88 = vld [vmem:[%s1 + $0x94] sm:$0xf]
  %v89 = vld [vmem:[%s1 + $0x98] sm:$0xf]
  %v90 = vld [vmem:[%s1 + $0x9c] sm:$0xf]
  %v91 = vld [vmem:[%s1 + $0xa0] sm:$0xf]
  %v92 = vld [vmem:[%s1 + $0xa4] sm:$0xf]
  %v93 = vld [vmem:[%s1 + $0xa8] sm:$0xf]
  %v94 = vld [vmem:[%s1 + $0xac] sm:$0xf]
  %v95 = vld [vmem:[%s1 + $0xb0] sm:$0xf]
  %v96 = vld [vmem:[%s1 + $0xb4] sm:$0xf]
  %v97 = vld [vmem:[%s1 + $0xb8] sm:$0xf]
  %v98 = vld [vmem:[%s1 + $0xbc] sm:$0xf]
  %v99 = vld [vmem:[%s2] sm:$0x1]
  %v101 = vlaneseq
  %v102 = vshrl.u32 %v101, 7
  %v103 = vsub.s32 0, %v102
  %v104 = vrot.slane %v99, %v103
  %v154 = vunpack.c.l.b16 %v51
  %v155 = vunpack.c.l.b16 %v52
  %v156 = vunpack.c.l.b16 %v53
  %v157 = vunpack.c.l.b16 %v54
  %v158 = vunpack.c.l.b16 %v55
  %v159 = vunpack.c.l.b16 %v56
  %v160 = vunpack.c.l.b16 %v57
  %v161 = vunpack.c.l.b16 %v58
  %v162 = vunpack.c.l.b16 %v59
  %v163 = vunpack.c.l.b16 %v60
  %v164 = vunpack.c.l.b16 %v61
  %v165 = vunpack.c.l.b16 %v62
  %v166 = vunpack.c.l.b16 %v63
  %v167 = vunpack.c.l.b16 %v64
  %v168 = vunpack.c.l.b16 %v65
  %v169 = vunpack.c.l.b16 %v66
  %v170 = vunpack.c.l.b16 %v67
  %v171 = vunpack.c.l.b16 %v68
  %v172 = vunpack.c.l.b16 %v69
  %v173 = vunpack.c.l.b16 %v70
  %v174 = vunpack.c.l.b16 %v71
  %v175 = vunpack.c.l.b16 %v72
  %v176 = vunpack.c.l.b16 %v73
  %v177 = vunpack.c.l.b16 %v74
  %v178 = vunpack.c.l.b16 %v75
  %v179 = vunpack.c.l.b16 %v76
  %v180 = vunpack.c.l.b16 %v77
  %v181 = vunpack.c.l.b16 %v78
  %v182 = vunpack.c.l.b16 %v79
  %v183 = vunpack.c.l.b16 %v80
  %v184 = vunpack.c.l.b16 %v81
  %v185 = vunpack.c.l.b16 %v82
  %v186 = vunpack.c.l.b16 %v83
  %v187 = vunpack.c.l.b16 %v84
  %v188 = vunpack.c.l.b16 %v85
  %v189 = vunpack.c.l.b16 %v86
  %v190 = vunpack.c.l.b16 %v87
  %v191 = vunpack.c.l.b16 %v88
  %v192 = vunpack.c.l.b16 %v89
  %v193 = vunpack.c.l.b16 %v90
  %v194 = vunpack.c.l.b16 %v91
  %v195 = vunpack.c.l.b16 %v92
  %v196 = vunpack.c.l.b16 %v93
  %v197 = vunpack.c.l.b16 %v94
  %v198 = vunpack.c.l.b16 %v95
  %v199 = vunpack.c.l.b16 %v96
  %v200 = vunpack.c.l.b16 %v97
  %v201 = vunpack.c.l.b16 %v98
  %v202 = vpack.c.b16 %v155, %v154
  %v203 = vpack.c.b16 %v157, %v156
  %v204 = vpack.c.b16 %v159, %v158
  %v205 = vpack.c.b16 %v161, %v160
  %v206 = vpack.c.b16 %v163, %v162
  %v207 = vpack.c.b16 %v165, %v164
  %v208 = vpack.c.b16 %v167, %v166
  %v209 = vpack.c.b16 %v169, %v168
  %v210 = vpack.c.b16 %v171, %v170
  %v211 = vpack.c.b16 %v173, %v172
  %v212 = vpack.c.b16 %v175, %v174
  %v213 = vpack.c.b16 %v177, %v176
  %v214 = vpack.c.b16 %v179, %v178
  %v215 = vpack.c.b16 %v181, %v180
  %v216 = vpack.c.b16 %v183, %v182
  %v217 = vpack.c.b16 %v185, %v184
  %v218 = vpack.c.b16 %v187, %v186
  %v219 = vpack.c.b16 %v189, %v188
  %v220 = vpack.c.b16 %v191, %v190
  %v221 = vpack.c.b16 %v193, %v192
  %v222 = vpack.c.b16 %v195, %v194
  %v223 = vpack.c.b16 %v197, %v196
  %v224 = vpack.c.b16 %v199, %v198
  %v225 = vpack.c.b16 %v201, %v200
  %250 = vmatprep.subr.bf16.mxu0 0
  %251 = vmatpush1.bf16.msra.mxu0 %v209
  %252 = vmatprep.subr.bf16.mxu0 0
  %253 = vmatpush1.bf16.msra.mxu0 %v208
  %254 = vmatprep.subr.bf16.mxu0 0
  %255 = vmatpush1.bf16.msra.mxu0 %v207
  %256 = vmatprep.subr.bf16.mxu0 0
  %257 = vmatpush1.bf16.msra.mxu0 %v206
  %258 = vmatprep.subr.bf16.mxu0 0
  %259 = vmatpush1.bf16.msra.mxu0 %v205
  %260 = vmatprep.subr.bf16.mxu0 0
  %261 = vmatpush1.bf16.msra.mxu0 %v204
  %262 = vmatprep.subr.bf16.mxu0 0
  %263 = vmatpush1.bf16.msra.mxu0 %v203
  %264 = vmatprep.subr.bf16.mxu0 0
  %265 = vmatpush1.bf16.msra.mxu0 %v202
  %266 = vmatprep.subr.bf16.mxu0 0
  %267 = vmatpush2.bf16.msra.mxu0 %v217
  %268 = vmatprep.subr.bf16.mxu0 0
  %269 = vmatpush2.bf16.msra.mxu0 %v216
  %270 = vmatprep.subr.bf16.mxu0 0
  %271 = vmatpush2.bf16.msra.mxu0 %v215
  %272 = vmatprep.subr.bf16.mxu0 0
  %273 = vmatpush2.bf16.msra.mxu0 %v214
  %274 = vmatprep.subr.bf16.mxu0 0
  %275 = vmatpush2.bf16.msra.mxu0 %v213
  %276 = vmatprep.subr.bf16.mxu0 0
  %277 = vmatpush2.bf16.msra.mxu0 %v212
  %278 = vmatprep.subr.bf16.mxu0 0
  %279 = vmatpush2.bf16.msra.mxu0 %v211
  %280 = vmatprep.subr.bf16.mxu0 0
  %281 = vmatpush2.bf16.msra.mxu0 %v210
  %282 = vmatprep.mubr.bf16.mxu0 %v46
  %283 = vmatmul.mubr.bf16.gmra.mxu0 %v45
  %v284 = vpop.f32.mrf.mxu0
  %v285 = vadd.f32 %v104, %v284
  %v286 = vpop.f32.mrf.mxu0
  %v287 = vpop.f32.mrf.mxu0
  %v288 = vadd.f32 %v104, %v287
  %v289 = vpop.f32.mrf.mxu0
  %290 = vmatprep.mubr.bf16.mxu0 %v49
  %291 = vmatmul.mubr.bf16.gmra.mxu0 %v48
  %v292 = vpop.f32.mrf.mxu0
  %v293 = vadd.f32 %v104, %v292
  %v294 = vpop.f32.mrf.mxu0
  %v295 = vpop.f32.mrf.mxu0
  %v296 = vadd.f32 %v104, %v295
  %v297 = vpop.f32.mrf.mxu0
  %298 = vdwg.mxu0
  %299 = vmatprep.subr.bf16.mxu0 0
  %300 = vmatpush1.bf16.msra.mxu0 %v225
  %301 = vmatprep.subr.bf16.mxu0 0
  %302 = vmatpush1.bf16.msra.mxu0 %v224
  %303 = vmatprep.subr.bf16.mxu0 0
  %304 = vmatpush1.bf16.msra.mxu0 %v223
  %305 = vmatprep.subr.bf16.mxu0 0
  %306 = vmatpush1.bf16.msra.mxu0 %v222
  %307 = vmatprep.subr.bf16.mxu0 0
  %308 = vmatpush1.bf16.msra.mxu0 %v221
  %309 = vmatprep.subr.bf16.mxu0 0
  %310 = vmatpush1.bf16.msra.mxu0 %v220
  %311 = vmatprep.subr.bf16.mxu0 0
  %312 = vmatpush1.bf16.msra.mxu0 %v219
  %313 = vmatprep.subr.bf16.mxu0 0
  %314 = vmatpush1.bf16.msra.mxu0 %v218
  %315 = vmatprep.subr.bf16.mxu0 0
  %316 = vmatpush2.bf16.msra.mxu0 0
  %317 = vmatprep.subr.bf16.mxu0 0
  %318 = vmatpush2.bf16.msra.mxu0 0
  %319 = vmatprep.subr.bf16.mxu0 0
  %320 = vmatpush2.bf16.msra.mxu0 0
  %321 = vmatprep.subr.bf16.mxu0 0
  %322 = vmatpush2.bf16.msra.mxu0 0
  %323 = vmatprep.subr.bf16.mxu0 0
  %324 = vmatpush2.bf16.msra.mxu0 0
  %325 = vmatprep.subr.bf16.mxu0 0
  %326 = vmatpush2.bf16.msra.mxu0 0
  %327 = vmatprep.subr.bf16.mxu0 0
  %328 = vmatpush2.bf16.msra.mxu0 0
  %329 = vmatprep.subr.bf16.mxu0 0
  %330 = vmatpush2.bf16.msra.mxu0 0
  %331 = vmatprep.mubr.bf16.mxu0 0
  %332 = vmatmul.mubr.bf16.gmra.mxu0 %v47
  %v333 = vpop.f32.mrf.mxu0
  %v334 = vadd.f32 %v285, %v333
  %v335 = vpop.f32.mrf.mxu0
  %v336 = vpop.f32.mrf.mxu0
  %v337 = vadd.f32 %v288, %v336
  %v338 = vpop.f32.mrf.mxu0
  %339 = vmatprep.mubr.bf16.mxu0 0
  %340 = vmatmul.mubr.bf16.gmra.mxu0 %v50
  %v341 = vpop.f32.mrf.mxu0
  %v342 = vadd.f32 %v293, %v341
  %v343 = vpop.f32.mrf.mxu0
  %v344 = vpop.f32.mrf.mxu0
  %v345 = vadd.f32 %v296, %v344
  %v346 = vpop.f32.mrf.mxu0
  %347 = vdwg.mxu0
  %v348 = vmax.f32 %v334, 0.0
  %v349 = vmax.f32 %v337, 0.0
  %v350 = vmax.f32 %v342, 0.0
  %v351 = vmax.f32 %v345, 0.0
  %352 = vst [vmem:[#allocation2 + $0x4] sm:$0xff] %v348
  %353 = vst [vmem:[#allocation2 + $0xc] sm:$0xff] %v349
  %354 = vst [vmem:[#allocation2 + $0x1c] sm:$0xff] %v350
  %355 = vst [vmem:[#allocation2 + $0x24] sm:$0xff] %v351
  %v356 = vld [vmem:[#allocation2] sm:$0xff]
  %v357 = vld [vmem:[#allocation2 + $0x8] sm:$0xff]
  %v358 = vld [vmem:[#allocation2 + $0x18] sm:$0xff]
  %v359 = vld [vmem:[#allocation2 + $0x20] sm:$0xff]
  %v360 = vld [vmem:[#allocation2 + $0x2] sm:$0xff]
  %v361 = vld [vmem:[#allocation2 + $0xa] sm:$0xff]
  %v362 = vld [vmem:[#allocation2 + $0x1a] sm:$0xff]
  %v363 = vld [vmem:[#allocation2 + $0x22] sm:$0xff]
  %v364 = vld [vmem:[#allocation2 + $0x4] sm:$0xff]
  %v365 = vld [vmem:[#allocation2 + $0xc] sm:$0xff]
  %v366 = vld [vmem:[#allocation2 + $0x1c] sm:$0xff]
  %v367 = vld [vmem:[#allocation2 + $0x24] sm:$0xff]
  %v368 = vpack.c.bf16 %v357, %v356
  %v369 = vpack.c.bf16 %v361, %v360
  %v370 = vpack.c.bf16 %v365, %v364
  %v371 = vpack.c.bf16 %v359, %v358
  %v372 = vpack.c.bf16 %v363, %v362
  %v373 = vpack.c.bf16 %v367, %v366
  %v374 = vld [vmem:[%s3] sm:$0xf]
  %v375 = vld [vmem:[%s3 + $0x4] sm:$0xf]
  %v376 = vld [vmem:[%s3 + $0x8] sm:$0xf]
  %v377 = vld [vmem:[%s3 + $0xc] sm:$0xf]
  %v378 = vld [vmem:[%s3 + $0x10] sm:$0xf]
  %v379 = vld [vmem:[%s3 + $0x14] sm:$0xf]
  %v380 = vld [vmem:[%s3 + $0x18] sm:$0xf]
  %v381 = vld [vmem:[%s3 + $0x1c] sm:$0xf]
  %v382 = vld [vmem:[%s3 + $0x20] sm:$0xf]
  %v383 = vld [vmem:[%s3 + $0x24] sm:$0xf]
  %v384 = vld [vmem:[%s3 + $0x28] sm:$0xf]
  %v385 = vld [vmem:[%s3 + $0x2c] sm:$0xf]
  %v386 = vld [vmem:[%s3 + $0x30] sm:$0xf]
  %v387 = vld [vmem:[%s3 + $0x34] sm:$0xf]
  %v388 = vld [vmem:[%s3 + $0x38] sm:$0xf]
  %v389 = vld [vmem:[%s3 + $0x3c] sm:$0xf]
  %v390 = vld [vmem:[%s3 + $0x40] sm:$0xf]
  %v391 = vld [vmem:[%s3 + $0x44] sm:$0xf]
  %v392 = vld [vmem:[%s3 + $0x48] sm:$0xf]
  %v393 = vld [vmem:[%s3 + $0x4c] sm:$0xf]
  %v394 = vld [vmem:[%s3 + $0x50] sm:$0xf]
  %v395 = vld [vmem:[%s3 + $0x54] sm:$0xf]
  %v396 = vld [vmem:[%s3 + $0x58] sm:$0xf]
  %v397 = vld [vmem:[%s3 + $0x5c] sm:$0xf]
  %v398 = vld [vmem:[%s3 + $0x60] sm:$0xf]
  %v399 = vld [vmem:[%s3 + $0x64] sm:$0xf]
  %v400 = vld [vmem:[%s3 + $0x68] sm:$0xf]
  %v401 = vld [vmem:[%s3 + $0x6c] sm:$0xf]
  %v402 = vld [vmem:[%s3 + $0x70] sm:$0xf]
  %v403 = vld [vmem:[%s3 + $0x74] sm:$0xf]
  %v404 = vld [vmem:[%s3 + $0x78] sm:$0xf]
  %v405 = vld [vmem:[%s3 + $0x7c] sm:$0xf]
  %v406 = vld [vmem:[%s3 + $0x80] sm:$0xf]
  %v407 = vld [vmem:[%s3 + $0x84] sm:$0xf]
  %v408 = vld [vmem:[%s3 + $0x88] sm:$0xf]
  %v409 = vld [vmem:[%s3 + $0x8c] sm:$0xf]
  %v410 = vld [vmem:[%s3 + $0x90] sm:$0xf]
  %v411 = vld [vmem:[%s3 + $0x94] sm:$0xf]
  %v412 = vld [vmem:[%s3 + $0x98] sm:$0xf]
  %v413 = vld [vmem:[%s3 + $0x9c] sm:$0xf]
  %v414 = vld [vmem:[%s3 + $0xa0] sm:$0xf]
  %v415 = vld [vmem:[%s3 + $0xa4] sm:$0xf]
  %v416 = vld [vmem:[%s3 + $0xa8] sm:$0xf]
  %v417 = vld [vmem:[%s3 + $0xac] sm:$0xf]
  %v418 = vld [vmem:[%s3 + $0xb0] sm:$0xf]
  %v419 = vld [vmem:[%s3 + $0xb4] sm:$0xf]
  %v420 = vld [vmem:[%s3 + $0xb8] sm:$0xf]
  %v421 = vld [vmem:[%s3 + $0xbc] sm:$0xf]
  %v422 = vld [vmem:[%s4] sm:$0x1]
  %v424 = vlaneseq
  %v425 = vshrl.u32 %v424, 7
  %v426 = vsub.s32 0, %v425
  %v427 = vrot.slane %v422, %v426
  %v477 = vunpack.c.l.b16 %v374
  %v478 = vunpack.c.l.b16 %v375
  %v479 = vunpack.c.l.b16 %v376
  %v480 = vunpack.c.l.b16 %v377
  %v481 = vunpack.c.l.b16 %v378
  %v482 = vunpack.c.l.b16 %v379
  %v483 = vunpack.c.l.b16 %v380
  %v484 = vunpack.c.l.b16 %v381
  %v485 = vunpack.c.l.b16 %v382
  %v486 = vunpack.c.l.b16 %v383
  %v487 = vunpack.c.l.b16 %v384
  %v488 = vunpack.c.l.b16 %v385
  %v489 = vunpack.c.l.b16 %v386
  %v490 = vunpack.c.l.b16 %v387
  %v491 = vunpack.c.l.b16 %v388
  %v492 = vunpack.c.l.b16 %v389
  %v493 = vunpack.c.l.b16 %v390
  %v494 = vunpack.c.l.b16 %v391
  %v495 = vunpack.c.l.b16 %v392
  %v496 = vunpack.c.l.b16 %v393
  %v497 = vunpack.c.l.b16 %v394
  %v498 = vunpack.c.l.b16 %v395
  %v499 = vunpack.c.l.b16 %v396
  %v500 = vunpack.c.l.b16 %v397
  %v501 = vunpack.c.l.b16 %v398
  %v502 = vunpack.c.l.b16 %v399
  %v503 = vunpack.c.l.b16 %v400
  %v504 = vunpack.c.l.b16 %v401
  %v505 = vunpack.c.l.b16 %v402
  %v506 = vunpack.c.l.b16 %v403
  %v507 = vunpack.c.l.b16 %v404
  %v508 = vunpack.c.l.b16 %v405
  %v509 = vunpack.c.l.b16 %v406
  %v510 = vunpack.c.l.b16 %v407
  %v511 = vunpack.c.l.b16 %v408
  %v512 = vunpack.c.l.b16 %v409
  %v513 = vunpack.c.l.b16 %v410
  %v514 = vunpack.c.l.b16 %v411
  %v515 = vunpack.c.l.b16 %v412
  %v516 = vunpack.c.l.b16 %v413
  %v517 = vunpack.c.l.b16 %v414
  %v518 = vunpack.c.l.b16 %v415
  %v519 = vunpack.c.l.b16 %v416
  %v520 = vunpack.c.l.b16 %v417
  %v521 = vunpack.c.l.b16 %v418
  %v522 = vunpack.c.l.b16 %v419
  %v523 = vunpack.c.l.b16 %v420
  %v524 = vunpack.c.l.b16 %v421
  %v525 = vpack.c.b16 %v478, %v477
  %v526 = vpack.c.b16 %v480, %v479
  %v527 = vpack.c.b16 %v482, %v481
  %v528 = vpack.c.b16 %v484, %v483
  %v529 = vpack.c.b16 %v486, %v485
  %v530 = vpack.c.b16 %v488, %v487
  %v531 = vpack.c.b16 %v490, %v489
  %v532 = vpack.c.b16 %v492, %v491
  %v533 = vpack.c.b16 %v494, %v493
  %v534 = vpack.c.b16 %v496, %v495
  %v535 = vpack.c.b16 %v498, %v497
  %v536 = vpack.c.b16 %v500, %v499
  %v537 = vpack.c.b16 %v502, %v501
  %v538 = vpack.c.b16 %v504, %v503
  %v539 = vpack.c.b16 %v506, %v505
  %v540 = vpack.c.b16 %v508, %v507
  %v541 = vpack.c.b16 %v510, %v509
  %v542 = vpack.c.b16 %v512, %v511
  %v543 = vpack.c.b16 %v514, %v513
  %v544 = vpack.c.b16 %v516, %v515
  %v545 = vpack.c.b16 %v518, %v517
  %v546 = vpack.c.b16 %v520, %v519
  %v547 = vpack.c.b16 %v522, %v521
  %v548 = vpack.c.b16 %v524, %v523
  %573 = vmatprep.subr.bf16.mxu0 0
  %574 = vmatpush1.bf16.msra.mxu0 %v532
  %575 = vmatprep.subr.bf16.mxu0 0
  %576 = vmatpush1.bf16.msra.mxu0 %v531
  %577 = vmatprep.subr.bf16.mxu0 0
  %578 = vmatpush1.bf16.msra.mxu0 %v530
  %579 = vmatprep.subr.bf16.mxu0 0
  %580 = vmatpush1.bf16.msra.mxu0 %v529
  %581 = vmatprep.subr.bf16.mxu0 0
  %582 = vmatpush1.bf16.msra.mxu0 %v528
  %583 = vmatprep.subr.bf16.mxu0 0
  %584 = vmatpush1.bf16.msra.mxu0 %v527
  %585 = vmatprep.subr.bf16.mxu0 0
  %586 = vmatpush1.bf16.msra.mxu0 %v526
  %587 = vmatprep.subr.bf16.mxu0 0
  %588 = vmatpush1.bf16.msra.mxu0 %v525
  %589 = vmatprep.subr.bf16.mxu0 0
  %590 = vmatpush2.bf16.msra.mxu0 %v540
  %591 = vmatprep.subr.bf16.mxu0 0
  %592 = vmatpush2.bf16.msra.mxu0 %v539
  %593 = vmatprep.subr.bf16.mxu0 0
  %594 = vmatpush2.bf16.msra.mxu0 %v538
  %595 = vmatprep.subr.bf16.mxu0 0
  %596 = vmatpush2.bf16.msra.mxu0 %v537
  %597 = vmatprep.subr.bf16.mxu0 0
  %598 = vmatpush2.bf16.msra.mxu0 %v536
  %599 = vmatprep.subr.bf16.mxu0 0
  %600 = vmatpush2.bf16.msra.mxu0 %v535
  %601 = vmatprep.subr.bf16.mxu0 0
  %602 = vmatpush2.bf16.msra.mxu0 %v534
  %603 = vmatprep.subr.bf16.mxu0 0
  %604 = vmatpush2.bf16.msra.mxu0 %v533
  %605 = vmatprep.mubr.bf16.mxu0 %v369
  %606 = vmatmul.mubr.bf16.gmra.mxu0 %v368
  %v607 = vpop.f32.mrf.mxu0
  %v608 = vadd.f32 %v427, %v607
  %v609 = vpop.f32.mrf.mxu0
  %v610 = vpop.f32.mrf.mxu0
  %v611 = vadd.f32 %v427, %v610
  %v612 = vpop.f32.mrf.mxu0
  %613 = vmatprep.mubr.bf16.mxu0 %v372
  %614 = vmatmul.mubr.bf16.gmra.mxu0 %v371
  %v615 = vpop.f32.mrf.mxu0
  %v616 = vadd.f32 %v427, %v615
  %v617 = vpop.f32.mrf.mxu0
  %v618 = vpop.f32.mrf.mxu0
  %v619 = vadd.f32 %v427, %v618
  %v620 = vpop.f32.mrf.mxu0
  %621 = vdwg.mxu0
  %622 = vmatprep.subr.bf16.mxu0 0
  %623 = vmatpush1.bf16.msra.mxu0 %v548
  %624 = vmatprep.subr.bf16.mxu0 0
  %625 = vmatpush1.bf16.msra.mxu0 %v547
  %626 = vmatprep.subr.bf16.mxu0 0
  %627 = vmatpush1.bf16.msra.mxu0 %v546
  %628 = vmatprep.subr.bf16.mxu0 0
  %629 = vmatpush1.bf16.msra.mxu0 %v545
  %630 = vmatprep.subr.bf16.mxu0 0
  %631 = vmatpush1.bf16.msra.mxu0 %v544
  %632 = vmatprep.subr.bf16.mxu0 0
  %633 = vmatpush1.bf16.msra.mxu0 %v543
  %634 = vmatprep.subr.bf16.mxu0 0
  %635 = vmatpush1.bf16.msra.mxu0 %v542
  %636 = vmatprep.subr.bf16.mxu0 0
  %637 = vmatpush1.bf16.msra.mxu0 %v541
  %638 = vmatprep.subr.bf16.mxu0 0
  %639 = vmatpush2.bf16.msra.mxu0 0
  %640 = vmatprep.subr.bf16.mxu0 0
  %641 = vmatpush2.bf16.msra.mxu0 0
  %642 = vmatprep.subr.bf16.mxu0 0
  %643 = vmatpush2.bf16.msra.mxu0 0
  %644 = vmatprep.subr.bf16.mxu0 0
  %645 = vmatpush2.bf16.msra.mxu0 0
  %646 = vmatprep.subr.bf16.mxu0 0
  %647 = vmatpush2.bf16.msra.mxu0 0
  %648 = vmatprep.subr.bf16.mxu0 0
  %649 = vmatpush2.bf16.msra.mxu0 0
  %650 = vmatprep.subr.bf16.mxu0 0
  %651 = vmatpush2.bf16.msra.mxu0 0
  %652 = vmatprep.subr.bf16.mxu0 0
  %653 = vmatpush2.bf16.msra.mxu0 0
  %654 = vmatprep.mubr.bf16.mxu0 0
  %655 = vmatmul.mubr.bf16.gmra.mxu0 %v370
  %v656 = vpop.f32.mrf.mxu0
  %v657 = vadd.f32 %v608, %v656
  %v658 = vpop.f32.mrf.mxu0
  %v659 = vpop.f32.mrf.mxu0
  %v660 = vadd.f32 %v611, %v659
  %v661 = vpop.f32.mrf.mxu0
  %662 = vmatprep.mubr.bf16.mxu0 0
  %663 = vmatmul.mubr.bf16.gmra.mxu0 %v373
  %v664 = vpop.f32.mrf.mxu0
  %v665 = vadd.f32 %v616, %v664
  %v666 = vpop.f32.mrf.mxu0
  %v667 = vpop.f32.mrf.mxu0
  %v668 = vadd.f32 %v619, %v667
  %v669 = vpop.f32.mrf.mxu0
  %670 = vdwg.mxu0
  %v671 = vmax.f32 %v657, 0.0
  %v672 = vmax.f32 %v660, 0.0
  %v673 = vmax.f32 %v665, 0.0
  %v674 = vmax.f32 %v668, 0.0
  %v675 = vld [vmem:[%s0 + $0x4] sm:$0xff]
  %v676 = vld [vmem:[%s0 + $0xc] sm:$0xff]
  %v677 = vld [vmem:[%s0 + $0x1c] sm:$0xff]
  %v678 = vld [vmem:[%s0 + $0x24] sm:$0xff]
  %v679 = vpack.c.bf16 %v676, %v675
  %v680 = vpack.c.bf16 %v678, %v677
  %v681 = vld [vmem:[%s5] sm:$0xf]
  %v682 = vld [vmem:[%s5 + $0x4] sm:$0xf]
  %v683 = vld [vmem:[%s5 + $0x8] sm:$0xf]
  %v684 = vld [vmem:[%s5 + $0xc] sm:$0xf]
  %v685 = vld [vmem:[%s5 + $0x10] sm:$0xf]
  %v686 = vld [vmem:[%s5 + $0x14] sm:$0xf]
  %v687 = vld [vmem:[%s5 + $0x18] sm:$0xf]
  %v688 = vld [vmem:[%s5 + $0x1c] sm:$0xf]
  %v689 = vld [vmem:[%s5 + $0x20] sm:$0xf]
  %v690 = vld [vmem:[%s5 + $0x24] sm:$0xf]
  %v691 = vld [vmem:[%s5 + $0x28] sm:$0xf]
  %v692 = vld [vmem:[%s5 + $0x2c] sm:$0xf]
  %v693 = vld [vmem:[%s5 + $0x30] sm:$0xf]
  %v694 = vld [vmem:[%s5 + $0x34] sm:$0xf]
  %v695 = vld [vmem:[%s5 + $0x38] sm:$0xf]
  %v696 = vld [vmem:[%s5 + $0x3c] sm:$0xf]
  %v697 = vld [vmem:[%s6] sm:$0x1]
  %v699 = vlaneseq
  %v700 = vshrl.u32 %v699, 7
  %v701 = vsub.s32 0, %v700
  %v702 = vrot.slane %v697, %v701
  %v720 = vunpack.c.l.b16 %v681
  %v721 = vunpack.c.l.b16 %v682
  %v722 = vunpack.c.l.b16 %v683
  %v723 = vunpack.c.l.b16 %v684
  %v724 = vunpack.c.l.b16 %v685
  %v725 = vunpack.c.l.b16 %v686
  %v726 = vunpack.c.l.b16 %v687
  %v727 = vunpack.c.l.b16 %v688
  %v728 = vunpack.c.l.b16 %v689
  %v729 = vunpack.c.l.b16 %v690
  %v730 = vunpack.c.l.b16 %v691
  %v731 = vunpack.c.l.b16 %v692
  %v732 = vunpack.c.l.b16 %v693
  %v733 = vunpack.c.l.b16 %v694
  %v734 = vunpack.c.l.b16 %v695
  %v735 = vunpack.c.l.b16 %v696
  %v736 = vpack.c.b16 %v721, %v720
  %v737 = vpack.c.b16 %v723, %v722
  %v738 = vpack.c.b16 %v725, %v724
  %v739 = vpack.c.b16 %v727, %v726
  %v740 = vpack.c.b16 %v729, %v728
  %v741 = vpack.c.b16 %v731, %v730
  %v742 = vpack.c.b16 %v733, %v732
  %v743 = vpack.c.b16 %v735, %v734
  %752 = vmatprep.subr.bf16.mxu0 0
  %753 = vmatpush1.bf16.msra.mxu0 %v743
  %754 = vmatprep.subr.bf16.mxu0 0
  %755 = vmatpush1.bf16.msra.mxu0 %v742
  %756 = vmatprep.subr.bf16.mxu0 0
  %757 = vmatpush1.bf16.msra.mxu0 %v741
  %758 = vmatprep.subr.bf16.mxu0 0
  %759 = vmatpush1.bf16.msra.mxu0 %v740
  %760 = vmatprep.subr.bf16.mxu0 0
  %761 = vmatpush1.bf16.msra.mxu0 %v739
  %762 = vmatprep.subr.bf16.mxu0 0
  %763 = vmatpush1.bf16.msra.mxu0 %v738
  %764 = vmatprep.subr.bf16.mxu0 0
  %765 = vmatpush1.bf16.msra.mxu0 %v737
  %766 = vmatprep.subr.bf16.mxu0 0
  %767 = vmatpush1.bf16.msra.mxu0 %v736
  %768 = vmatprep.subr.bf16.mxu0 0
  %769 = vmatpush2.bf16.msra.mxu0 0
  %770 = vmatprep.subr.bf16.mxu0 0
  %771 = vmatpush2.bf16.msra.mxu0 0
  %772 = vmatprep.subr.bf16.mxu0 0
  %773 = vmatpush2.bf16.msra.mxu0 0
  %774 = vmatprep.subr.bf16.mxu0 0
  %775 = vmatpush2.bf16.msra.mxu0 0
  %776 = vmatprep.subr.bf16.mxu0 0
  %777 = vmatpush2.bf16.msra.mxu0 0
  %778 = vmatprep.subr.bf16.mxu0 0
  %779 = vmatpush2.bf16.msra.mxu0 0
  %780 = vmatprep.subr.bf16.mxu0 0
  %781 = vmatpush2.bf16.msra.mxu0 0
  %782 = vmatprep.subr.bf16.mxu0 0
  %783 = vmatpush2.bf16.msra.mxu0 0
  %784 = vmatprep.mubr.bf16.mxu0 0
  %785 = vmatmul.mubr.bf16.gmra.mxu0 %v679
  %v786 = vpop.f32.mrf.mxu0
  %v787 = vadd.f32 %v702, %v786
  %v788 = vpop.f32.mrf.mxu0
  %v789 = vpop.f32.mrf.mxu0
  %v790 = vadd.f32 %v702, %v789
  %v791 = vpop.f32.mrf.mxu0
  %792 = vmatprep.mubr.bf16.mxu0 0
  %793 = vmatmul.mubr.bf16.gmra.mxu0 %v680
  %v794 = vpop.f32.mrf.mxu0
  %v795 = vadd.f32 %v702, %v794
  %v796 = vpop.f32.mrf.mxu0
  %v797 = vpop.f32.mrf.mxu0
  %v798 = vadd.f32 %v702, %v797
  %v799 = vpop.f32.mrf.mxu0
  %800 = vdwg.mxu0
  %v801 = vadd.f32 %v671, %v787
  %v802 = vadd.f32 %v672, %v790
  %v803 = vadd.f32 %v673, %v795
  %v804 = vadd.f32 %v674, %v798
  %v805 = vmax.f32 %v801, 0.0
  %v806 = vmax.f32 %v802, 0.0
  %v807 = vmax.f32 %v803, 0.0
  %v808 = vmax.f32 %v804, 0.0
  %809 = vst [vmem:[%s7] sm:$0xff] %v805
  %810 = vst [vmem:[%s7 + $0x8] sm:$0xff] %v806
  %811 = vst [vmem:[%s7 + $0x10] sm:$0xff] %v807
  %812 = vst [vmem:[%s7 + $0x18] sm:$0xff] %v808
  // Predicated region
  $region34: #{dcconv_forward.1} parent=0 // pred_check
    _
  $region35: #{dcconv_forward.1} parent=0 // pred_check_branch
    %814 = sbr.rel (0) target = $region37
  $region36: #{dcconv_forward.1} parent=0 // pred_region
    _
  $region37: #{dcconv_forward.1} parent=0 // pred_fallthru
    _
  // Predicated region
  $region38: #{dcconv_forward.1} parent=0 // pred_check
    _
  $region39: #{dcconv_forward.1} parent=0 // pred_check_branch
    %816 = sbr.rel (0) target = $region41
  $region40: #{dcconv_forward.1} parent=0 // pred_region
    _
  $region41: #{dcconv_forward.1} parent=0 // pred_fallthru
    _

</llo_original>
